<compile_context>
chip_gen: v7x
topology: tpu7x:2x2x1
jax: 0.10.0
libtpu: 0.0.40
codegen_flags: <defaults>
</compile_context>

<pallas_src>
import functools

import jax
import jax.numpy as jnp
from jax import lax
from jax.experimental import pallas as pl
from jax.experimental.pallas import tpu as pltpu


def _round_up(x, m):
    return ((x + m - 1) // m) * m


def _largest_divisor_tile(total, unit, max_tile):
    """Largest multiple of `unit` that divides `total` and is <= max_tile."""
    best = unit
    t = unit
    limit = min(total, max_tile)
    while t <= limit:
        if total % t == 0:
            best = t
        t += unit
    return best


def _embed_gather_kernel(idx_ref, tok_hbm, pos_ref, x_ref, stage_ref, sems,
                         *, seq_len, ring):
    """One grid step = one batch row: x[b] = tok_emb[idx[b, :]] + pos_emb[:S].

    idx_ref  : SMEM (B*S,) int32   flattened token ids (scalar prefetch)
    tok_hbm  : HBM  (V, E)         embedding table (row gather via DMA ring)
    pos_ref  : VMEM (S, E)         positional embeddings for positions [0, S)
    x_ref    : VMEM (1, S, E)      bf16 activations for this batch row (output)
    stage_ref: VMEM (S, E) f32     staging buffer for the gathered table rows
    sems     : DMA semaphore ring (ring,)
    """
    b = pl.program_id(0)
    base = b * seq_len

    def start_row(s):
        pltpu.make_async_copy(
            tok_hbm.at[pl.ds(idx_ref[base + s], 1)],   # (1, E) HBM table row
            stage_ref.at[pl.ds(s, 1)],                 # (1, E) staging row
            sems.at[s % ring],
        ).start()

    # Prime the ring (small static unroll: at most `ring` copies in flight).
    for r in range(min(ring, seq_len)):
        start_row(r)

    def body(s, carry):
        # Wait for row s (descriptor only needs a matching dst / sem / shape) ...
        pltpu.make_async_copy(
            tok_hbm.at[pl.ds(0, 1)],
            stage_ref.at[pl.ds(s, 1)],
            sems.at[s % ring],
        ).wait()

        # ... and immediately refill the ring `ring` rows ahead.
        @pl.when(s + ring < seq_len)
        def _():
            start_row(s + ring)

        return carry

    lax.fori_loop(0, seq_len, body, 0)

    # x = tok_emb[idx] + pos_emb[arange(S)] in f32, cast ONCE to the compute
    # dtype so the head kernel streams bf16 activations.
    # TODO(synk): nn.Dropout(drop_rate) is treated as identity (eval mode);
    # DummyTransformerBlock / DummyLayerNorm are identities by spec.
    x_ref[0] = (stage_ref[...] + pos_ref[...]).astype(x_ref.dtype)


def _head_matmul_kernel(x_ref, w_ref, out_ref):
    """logits[i*tm:(i+1)*tm, j*tv:(j+1)*tv] = x_tile @ w_tile.T (f32 MXU acc)."""
    out_ref[...] = lax.dot_general(
        x_ref[...], w_ref[...],
        dimension_numbers=(((1,), (1,)), ((), ())),   # contract on E; W keeps [V, E]
        preferred_element_type=jnp.float32,
    ).astype(out_ref.dtype)


def prepare_dummy_gpt_params(tok_emb, pos_emb, w_out, *,
                             compute_dtype=jnp.bfloat16, max_tv=2048):
    """One-time parameter prep (NOT per forward call): cast the output-head
    weight to the MXU compute dtype and pad the vocab dim to a tile multiple."""
    V, E = w_out.shape
    unit = 256 if V >= 256 else 128          # 256-wide N tiles for v6e/v7x MXU
    V_pad = _round_up(V, unit)
    tv = _largest_divisor_tile(V_pad, unit, max_tv)
    w = w_out.astype(compute_dtype)
    if V_pad != V:
        # TODO(synk): padded vocab columns are sliced off after the head matmul;
        # keep this pad and that slice in sync.
        w = jnp.pad(w, ((0, V_pad - V), (0, 0)))
    return {
        "tok_emb": tok_emb,
        "pos_emb": pos_emb,
        "w_head": w,
        "tv": int(tv),
        "vocab_size": int(V),
        "compute_dtype": compute_dtype,
    }


def dummy_gpt_forward(params, in_idx, *, out_dtype=jnp.float32,
                      max_tm=256, gather_ring=8):
    """in_idx: [B, S] int token ids -> logits [B, S, V].

    out_dtype: logits dtype; pass jnp.bfloat16 to halve the logits writeback
    (the dominant HBM traffic at GPT-scale vocab) when downstream accepts it.
    """
    tok_emb = params["tok_emb"]
    pos_emb = params["pos_emb"]
    w = params["w_head"]
    tv = params["tv"]
    V = params["vocab_size"]
    compute_dtype = params["compute_dtype"]

    B, S = in_idx.shape
    _, E = tok_emb.shape
    V_pad = w.shape[0]

    # ------------- Stage 1: embedding gather + positional add (Pallas) -------
    idx_flat = in_idx.reshape(B * S).astype(jnp.int32)
    pos_slice = pos_emb[:S]                 # pos_emb(arange(S)) == static slice
    ring = max(1, min(gather_ring, S))

    embed = pl.pallas_call(
        functools.partial(_embed_gather_kernel, seq_len=S, ring=ring),
        out_shape=jax.ShapeDtypeStruct((B, S, E), compute_dtype),
        grid_spec=pltpu.PrefetchScalarGridSpec(
            num_scalar_prefetch=1,                         # token ids -> SMEM
            grid=(B,),
            in_specs=[
                pl.BlockSpec(memory_space=pl.ANY),         # tok table stays in HBM
                pl.BlockSpec((S, E), lambda b, idx: (0, 0)),
            ],
            out_specs=pl.BlockSpec((1, S, E), lambda b, idx: (b, 0, 0)),
            scratch_shapes=[
                pltpu.VMEM((S, E), tok_emb.dtype),         # f32 staging rows
                pltpu.SemaphoreType.DMA((ring,)),          # small ring, not per-row sems
            ],
        ),
        compiler_params=pltpu.CompilerParams(
            dimension_semantics=("arbitrary",)),
    )
    x = embed(idx_flat, tok_emb, pos_slice)                # (B, S, E) bf16

    # TODO(synk): for GPT-2-scale vocabularies the per-row HBM gather above is
    # the right tool; for tiny tables that fit VMEM a single bulk table copy +
    # in-VMEM gather would additionally avoid the per-row DMA descriptor cost.

    # ------------- Stage 2: output head  logits = x @ W^T (Pallas) -----------
    M = B * S
    M_pad = _round_up(M, 16)                 # bf16 sublane-packing friendly
    x2 = x.reshape(M, E)                     # fold batch into the matmul M dim
    if M_pad != M:
        # TODO(synk): only hit for toy shapes where B*S isn't a multiple of 16.
        x2 = jnp.pad(x2, ((0, M_pad - M), (0, 0)))
    tm = _largest_divisor_tile(M_pad, 16, max_tm)

    itemsize_c = jnp.dtype(compute_dtype).itemsize
    itemsize_o = jnp.dtype(out_dtype).itemsize
    # Double-buffered x + w tiles plus the output tile, with generous headroom;
    # capped well below v7x's 64 MiB physical VMEM.
    tile_bytes = 2 * (tm * E * itemsize_c + tv * E * itemsize_c + tm * tv * itemsize_o)
    vmem_limit = int(min(max(4 * tile_bytes, 16 << 20), 48 << 20))

    head = pl.pallas_call(
        _head_matmul_kernel,
        out_shape=jax.ShapeDtypeStruct((M_pad, V_pad), out_dtype),
        grid_spec=pltpu.PrefetchScalarGridSpec(
            num_scalar_prefetch=0,
            grid=(M_pad // tm, V_pad // tv),
            in_specs=[
                pl.BlockSpec((tm, E), lambda i, j: (i, 0)),   # bf16 activations
                pl.BlockSpec((tv, E), lambda i, j: (j, 0)),   # bf16 weight tile ([V, E])
            ],
            out_specs=pl.BlockSpec((tm, tv), lambda i, j: (i, j)),  # lane-dense tile
        ),
        compiler_params=pltpu.CompilerParams(
            # Independent output tiles: both axes parallel -> megacore sharding.
            dimension_semantics=("parallel", "parallel"),
            vmem_limit_bytes=vmem_limit,
        ),
    )
    logits = head(x2, w)

    if M_pad != M or V_pad != V:
        # TODO(synk): this slice is an extra copy of the logits; tile sizes are
        # chosen so it is skipped whenever the shapes already tile evenly.
        logits = logits[:M, :V]
    return logits.reshape(B, S, V)


if __name__ == "__main__":
    # Scaled-down GPT_CONFIG_124M-style config (small shapes, same structure).
    cfg = {
        "vocab_size": 512,
        "context_length": 64,
        "emb_dim": 128,
        "n_heads": 4,
        "n_layers": 2,
        "drop_rate": 0.1,
        "qkv_bias": False,
    }
    B, S = 2, 8

    key = jax.random.PRNGKey(0)
    k_tok, k_pos, k_out, k_idx = jax.random.split(key, 4)

    tok_emb = 0.02 * jax.random.normal(
        k_tok, (cfg["vocab_size"], cfg["emb_dim"]), dtype=jnp.float32)
    pos_emb = 0.02 * jax.random.normal(
        k_pos, (cfg["context_length"], cfg["emb_dim"]), dtype=jnp.float32)
    # nn.Linear(emb_dim, vocab_size, bias=False) weight: [vocab, emb]
    w_out = 0.02 * jax.random.normal(
        k_out, (cfg["vocab_size"], cfg["emb_dim"]), dtype=jnp.float32)

    in_idx = jax.random.randint(
        k_idx, (B, S), 0, cfg["vocab_size"], dtype=jnp.int32)

    # One-time parameter prep (weight cast / pad hoisted out of the forward).
    params = prepare_dummy_gpt_params(tok_emb, pos_emb, w_out)

    logits = dummy_gpt_forward(params, in_idx)
    logits = jax.block_until_ready(logits)

    # Pure-JAX references.
    x_emb = tok_emb[in_idx] + pos_emb[:S][None, :, :]
    ref_f32 = x_emb @ w_out.T
    ref_matched = jax.lax.dot_general(      # same bf16-operand / f32-acc recipe
        x_emb.reshape(B * S, -1).astype(jnp.bfloat16),
        w_out.astype(jnp.bfloat16),
        dimension_numbers=(((1,), (1,)), ((), ())),
        preferred_element_type=jnp.float32).reshape(B, S, -1)

    assert logits.shape == (B, S, cfg["vocab_size"])
    assert jnp.allclose(logits, ref_matched, atol=1e-5, rtol=1e-3), \
        "mismatch vs matched-precision reference"
    assert jnp.allclose(logits, ref_f32, atol=5e-4, rtol=5e-2), \
        "mismatch vs full-f32 reference"
    print("KERNEL_OK")
</pallas_src>

<mosaic_0001>
module attributes {stable_mosaic.version = 11 : i64} {
  func.func @_embed_gather_kernel(%arg0: i32, %arg1: memref<16xi32, #tpu.memory_space<smem>>, %arg2: memref<512x128xf32, #tpu.memory_space<any>>, %arg3: memref<8x128xf32, #tpu.memory_space<vmem>>, %arg4: memref<1x8x128xbf16, #tpu.memory_space<vmem>>, %arg5: memref<8x128xf32, #tpu.memory_space<vmem>>, %arg6: memref<8x!tpu.dma_semaphore, #tpu.memory_space<semaphore_mem>>) attributes {dimension_semantics = [#tpu.dimension_semantics<arbitrary>], iteration_bounds = array<i64: 2>, scalar_prefetch = 1 : i64, scratch_operands = 2 : i64, tpu.core_type = #tpu.core_type<tc>, window_params = [{}, {pipeline_mode = #tpu.pipeline_mode<synchronous>, transform_indices = @transform_1, window_bounds = array<i64: 8, 128>}, {transform_indices = @transform_2, window_bounds = array<i64: 1, 8, 128>}]} {
    %c8_i32 = arith.constant 8 : i32
    %0 = arith.muli %arg0, %c8_i32 : i32
    %c0_i32 = arith.constant 0 : i32
    %1 = arith.addi %0, %c0_i32 : i32
    %2 = arith.index_cast %1 : i32 to index
    %3 = memref.load %arg1[%2] : memref<16xi32, #tpu.memory_space<smem>>
    %c0_i32_0 = arith.constant 0 : i32
    %c0_i32_1 = arith.constant 0 : i32
    %4 = tpu.memref_slice %arg2[%3, %c0_i32_1] : memref<512x128xf32, #tpu.memory_space<any>> -> memref<1x128xf32, #tpu.memory_space<any>>
    %c0_i32_2 = arith.constant 0 : i32
    %c0_i32_3 = arith.constant 0 : i32
    %5 = tpu.memref_slice %arg5[%c0_i32_2, %c0_i32_3] : memref<8x128xf32, #tpu.memory_space<vmem>> -> memref<1x128xf32, #tpu.memory_space<vmem>>
    %6 = tpu.memref_slice %arg6[%c0_i32_0] : memref<8x!tpu.dma_semaphore, #tpu.memory_space<semaphore_mem>> -> memref<1x!tpu.dma_semaphore, #tpu.memory_space<semaphore_mem>>
    %7 = tpu.memref_squeeze %6 : memref<1x!tpu.dma_semaphore, #tpu.memory_space<semaphore_mem>> -> memref<!tpu.dma_semaphore, #tpu.memory_space<semaphore_mem>>
    tpu.enqueue_dma source(%4 : memref<1x128xf32, #tpu.memory_space<any>>) target(%5 : memref<1x128xf32, #tpu.memory_space<vmem>>) target_semaphore(%7 : memref<!tpu.dma_semaphore, #tpu.memory_space<semaphore_mem>>)
    %c1_i32 = arith.constant 1 : i32
    %8 = arith.addi %0, %c1_i32 : i32
    %9 = arith.index_cast %8 : i32 to index
    %10 = memref.load %arg1[%9] : memref<16xi32, #tpu.memory_space<smem>>
    %c1_i32_4 = arith.constant 1 : i32
    %c0_i32_5 = arith.constant 0 : i32
    %11 = tpu.memref_slice %arg2[%10, %c0_i32_5] : memref<512x128xf32, #tpu.memory_space<any>> -> memref<1x128xf32, #tpu.memory_space<any>>
    %c1_i32_6 = arith.constant 1 : i32
    %c0_i32_7 = arith.constant 0 : i32
    %12 = tpu.memref_slice %arg5[%c1_i32_6, %c0_i32_7] : memref<8x128xf32, #tpu.memory_space<vmem>> -> memref<1x128xf32, #tpu.memory_space<vmem>>
    %13 = tpu.memref_slice %arg6[%c1_i32_4] : memref<8x!tpu.dma_semaphore, #tpu.memory_space<semaphore_mem>> -> memref<1x!tpu.dma_semaphore, #tpu.memory_space<semaphore_mem>>
    %14 = tpu.memref_squeeze %13 : memref<1x!tpu.dma_semaphore, #tpu.memory_space<semaphore_mem>> -> memref<!tpu.dma_semaphore, #tpu.memory_space<semaphore_mem>>
    tpu.enqueue_dma source(%11 : memref<1x128xf32, #tpu.memory_space<any>>) target(%12 : memref<1x128xf32, #tpu.memory_space<vmem>>) target_semaphore(%14 : memref<!tpu.dma_semaphore, #tpu.memory_space<semaphore_mem>>)
    %c2_i32 = arith.constant 2 : i32
    %15 = arith.addi %0, %c2_i32 : i32
    %16 = arith.index_cast %15 : i32 to index
    %17 = memref.load %arg1[%16] : memref<16xi32, #tpu.memory_space<smem>>
    %c2_i32_8 = arith.constant 2 : i32
    %c0_i32_9 = arith.constant 0 : i32
    %18 = tpu.memref_slice %arg2[%17, %c0_i32_9] : memref<512x128xf32, #tpu.memory_space<any>> -> memref<1x128xf32, #tpu.memory_space<any>>
    %c2_i32_10 = arith.constant 2 : i32
    %c0_i32_11 = arith.constant 0 : i32
    %19 = tpu.memref_slice %arg5[%c2_i32_10, %c0_i32_11] : memref<8x128xf32, #tpu.memory_space<vmem>> -> memref<1x128xf32, #tpu.memory_space<vmem>>
    %20 = tpu.memref_slice %arg6[%c2_i32_8] : memref<8x!tpu.dma_semaphore, #tpu.memory_space<semaphore_mem>> -> memref<1x!tpu.dma_semaphore, #tpu.memory_space<semaphore_mem>>
    %21 = tpu.memref_squeeze %20 : memref<1x!tpu.dma_semaphore, #tpu.memory_space<semaphore_mem>> -> memref<!tpu.dma_semaphore, #tpu.memory_space<semaphore_mem>>
    tpu.enqueue_dma source(%18 : memref<1x128xf32, #tpu.memory_space<any>>) target(%19 : memref<1x128xf32, #tpu.memory_space<vmem>>) target_semaphore(%21 : memref<!tpu.dma_semaphore, #tpu.memory_space<semaphore_mem>>)
    %c3_i32 = arith.constant 3 : i32
    %22 = arith.addi %0, %c3_i32 : i32
    %23 = arith.index_cast %22 : i32 to index
    %24 = memref.load %arg1[%23] : memref<16xi32, #tpu.memory_space<smem>>
    %c3_i32_12 = arith.constant 3 : i32
    %c0_i32_13 = arith.constant 0 : i32
    %25 = tpu.memref_slice %arg2[%24, %c0_i32_13] : memref<512x128xf32, #tpu.memory_space<any>> -> memref<1x128xf32, #tpu.memory_space<any>>
    %c3_i32_14 = arith.constant 3 : i32
    %c0_i32_15 = arith.constant 0 : i32
    %26 = tpu.memref_slice %arg5[%c3_i32_14, %c0_i32_15] : memref<8x128xf32, #tpu.memory_space<vmem>> -> memref<1x128xf32, #tpu.memory_space<vmem>>
    %27 = tpu.memref_slice %arg6[%c3_i32_12] : memref<8x!tpu.dma_semaphore, #tpu.memory_space<semaphore_mem>> -> memref<1x!tpu.dma_semaphore, #tpu.memory_space<semaphore_mem>>
    %28 = tpu.memref_squeeze %27 : memref<1x!tpu.dma_semaphore, #tpu.memory_space<semaphore_mem>> -> memref<!tpu.dma_semaphore, #tpu.memory_space<semaphore_mem>>
    tpu.enqueue_dma source(%25 : memref<1x128xf32, #tpu.memory_space<any>>) target(%26 : memref<1x128xf32, #tpu.memory_space<vmem>>) target_semaphore(%28 : memref<!tpu.dma_semaphore, #tpu.memory_space<semaphore_mem>>)
    %c4_i32 = arith.constant 4 : i32
    %29 = arith.addi %0, %c4_i32 : i32
    %30 = arith.index_cast %29 : i32 to index
    %31 = memref.load %arg1[%30] : memref<16xi32, #tpu.memory_space<smem>>
    %c4_i32_16 = arith.constant 4 : i32
    %c0_i32_17 = arith.constant 0 : i32
    %32 = tpu.memref_slice %arg2[%31, %c0_i32_17] : memref<512x128xf32, #tpu.memory_space<any>> -> memref<1x128xf32, #tpu.memory_space<any>>
    %c4_i32_18 = arith.constant 4 : i32
    %c0_i32_19 = arith.constant 0 : i32
    %33 = tpu.memref_slice %arg5[%c4_i32_18, %c0_i32_19] : memref<8x128xf32, #tpu.memory_space<vmem>> -> memref<1x128xf32, #tpu.memory_space<vmem>>
    %34 = tpu.memref_slice %arg6[%c4_i32_16] : memref<8x!tpu.dma_semaphore, #tpu.memory_space<semaphore_mem>> -> memref<1x!tpu.dma_semaphore, #tpu.memory_space<semaphore_mem>>
    %35 = tpu.memref_squeeze %34 : memref<1x!tpu.dma_semaphore, #tpu.memory_space<semaphore_mem>> -> memref<!tpu.dma_semaphore, #tpu.memory_space<semaphore_mem>>
    tpu.enqueue_dma source(%32 : memref<1x128xf32, #tpu.memory_space<any>>) target(%33 : memref<1x128xf32, #tpu.memory_space<vmem>>) target_semaphore(%35 : memref<!tpu.dma_semaphore, #tpu.memory_space<semaphore_mem>>)
    %c5_i32 = arith.constant 5 : i32
    %36 = arith.addi %0, %c5_i32 : i32
    %37 = arith.index_cast %36 : i32 to index
    %38 = memref.load %arg1[%37] : memref<16xi32, #tpu.memory_space<smem>>
    %c5_i32_20 = arith.constant 5 : i32
    %c0_i32_21 = arith.constant 0 : i32
    %39 = tpu.memref_slice %arg2[%38, %c0_i32_21] : memref<512x128xf32, #tpu.memory_space<any>> -> memref<1x128xf32, #tpu.memory_space<any>>
    %c5_i32_22 = arith.constant 5 : i32
    %c0_i32_23 = arith.constant 0 : i32
    %40 = tpu.memref_slice %arg5[%c5_i32_22, %c0_i32_23] : memref<8x128xf32, #tpu.memory_space<vmem>> -> memref<1x128xf32, #tpu.memory_space<vmem>>
    %41 = tpu.memref_slice %arg6[%c5_i32_20] : memref<8x!tpu.dma_semaphore, #tpu.memory_space<semaphore_mem>> -> memref<1x!tpu.dma_semaphore, #tpu.memory_space<semaphore_mem>>
    %42 = tpu.memref_squeeze %41 : memref<1x!tpu.dma_semaphore, #tpu.memory_space<semaphore_mem>> -> memref<!tpu.dma_semaphore, #tpu.memory_space<semaphore_mem>>
    tpu.enqueue_dma source(%39 : memref<1x128xf32, #tpu.memory_space<any>>) target(%40 : memref<1x128xf32, #tpu.memory_space<vmem>>) target_semaphore(%42 : memref<!tpu.dma_semaphore, #tpu.memory_space<semaphore_mem>>)
    %c6_i32 = arith.constant 6 : i32
    %43 = arith.addi %0, %c6_i32 : i32
    %44 = arith.index_cast %43 : i32 to index
    %45 = memref.load %arg1[%44] : memref<16xi32, #tpu.memory_space<smem>>
    %c6_i32_24 = arith.constant 6 : i32
    %c0_i32_25 = arith.constant 0 : i32
    %46 = tpu.memref_slice %arg2[%45, %c0_i32_25] : memref<512x128xf32, #tpu.memory_space<any>> -> memref<1x128xf32, #tpu.memory_space<any>>
    %c6_i32_26 = arith.constant 6 : i32
    %c0_i32_27 = arith.constant 0 : i32
    %47 = tpu.memref_slice %arg5[%c6_i32_26, %c0_i32_27] : memref<8x128xf32, #tpu.memory_space<vmem>> -> memref<1x128xf32, #tpu.memory_space<vmem>>
    %48 = tpu.memref_slice %arg6[%c6_i32_24] : memref<8x!tpu.dma_semaphore, #tpu.memory_space<semaphore_mem>> -> memref<1x!tpu.dma_semaphore, #tpu.memory_space<semaphore_mem>>
    %49 = tpu.memref_squeeze %48 : memref<1x!tpu.dma_semaphore, #tpu.memory_space<semaphore_mem>> -> memref<!tpu.dma_semaphore, #tpu.memory_space<semaphore_mem>>
    tpu.enqueue_dma source(%46 : memref<1x128xf32, #tpu.memory_space<any>>) target(%47 : memref<1x128xf32, #tpu.memory_space<vmem>>) target_semaphore(%49 : memref<!tpu.dma_semaphore, #tpu.memory_space<semaphore_mem>>)
    %c7_i32 = arith.constant 7 : i32
    %50 = arith.addi %0, %c7_i32 : i32
    %51 = arith.index_cast %50 : i32 to index
    %52 = memref.load %arg1[%51] : memref<16xi32, #tpu.memory_space<smem>>
    %c7_i32_28 = arith.constant 7 : i32
    %c0_i32_29 = arith.constant 0 : i32
    %53 = tpu.memref_slice %arg2[%52, %c0_i32_29] : memref<512x128xf32, #tpu.memory_space<any>> -> memref<1x128xf32, #tpu.memory_space<any>>
    %c7_i32_30 = arith.constant 7 : i32
    %c0_i32_31 = arith.constant 0 : i32
    %54 = tpu.memref_slice %arg5[%c7_i32_30, %c0_i32_31] : memref<8x128xf32, #tpu.memory_space<vmem>> -> memref<1x128xf32, #tpu.memory_space<vmem>>
    %55 = tpu.memref_slice %arg6[%c7_i32_28] : memref<8x!tpu.dma_semaphore, #tpu.memory_space<semaphore_mem>> -> memref<1x!tpu.dma_semaphore, #tpu.memory_space<semaphore_mem>>
    %56 = tpu.memref_squeeze %55 : memref<1x!tpu.dma_semaphore, #tpu.memory_space<semaphore_mem>> -> memref<!tpu.dma_semaphore, #tpu.memory_space<semaphore_mem>>
    tpu.enqueue_dma source(%53 : memref<1x128xf32, #tpu.memory_space<any>>) target(%54 : memref<1x128xf32, #tpu.memory_space<vmem>>) target_semaphore(%56 : memref<!tpu.dma_semaphore, #tpu.memory_space<semaphore_mem>>)
    %c0_i32_32 = arith.constant 0 : i32
    %c8_i32_33 = arith.constant 8 : i32
    %57 = arith.addi %c0_i32_32, %c8_i32_33 : i32
    %c1_i32_34 = arith.constant 1 : i32
    scf.for %arg7 = %c0_i32_32 to %57 step %c1_i32_34  : i32 {
      %c8_i32_42 = arith.constant 8 : i32
      %c0_i32_43 = arith.constant 0 : i32
      %65 = arith.cmpi eq, %c8_i32_42, %c0_i32_43 : i32
      %c1_i32_44 = arith.constant 1 : i32
      %66 = arith.select %65, %c1_i32_44, %c8_i32_42 : i32
      %67 = arith.remsi %arg7, %66 : i32
      %c0_i32_45 = arith.constant 0 : i32
      %68 = arith.cmpi ne, %67, %c0_i32_45 : i32
      %c0_i32_46 = arith.constant 0 : i32
      %69 = arith.cmpi slt, %67, %c0_i32_46 : i32
      %c0_i32_47 = arith.constant 0 : i32
      %70 = arith.cmpi slt, %66, %c0_i32_47 : i32
      %71 = arith.xori %69, %70 : i1
      %72 = arith.andi %71, %68 : i1
      %73 = arith.addi %67, %66 : i32
      %74 = arith.select %72, %73, %67 : i32
      %c0_i32_48 = arith.constant 0 : i32
      %c0_i32_49 = arith.constant 0 : i32
      %75 = tpu.memref_slice %arg2[%c0_i32_48, %c0_i32_49] : memref<512x128xf32, #tpu.memory_space<any>> -> memref<1x128xf32, #tpu.memory_space<any>>
      %c0_i32_50 = arith.constant 0 : i32
      %76 = tpu.memref_slice %arg5[%arg7, %c0_i32_50] : memref<8x128xf32, #tpu.memory_space<vmem>> -> memref<1x128xf32, #tpu.memory_space<vmem>>
      %77 = tpu.memref_slice %arg6[%74] : memref<8x!tpu.dma_semaphore, #tpu.memory_space<semaphore_mem>> -> memref<1x!tpu.dma_semaphore, #tpu.memory_space<semaphore_mem>>
      %78 = tpu.memref_squeeze %77 : memref<1x!tpu.dma_semaphore, #tpu.memory_space<semaphore_mem>> -> memref<!tpu.dma_semaphore, #tpu.memory_space<semaphore_mem>>
      tpu.wait_dma2 semaphore(%78 : memref<!tpu.dma_semaphore, #tpu.memory_space<semaphore_mem>>) src(%75 : memref<1x128xf32, #tpu.memory_space<any>>) dst(%76 : memref<1x128xf32, #tpu.memory_space<vmem>>)
      %c8_i32_51 = arith.constant 8 : i32
      %79 = arith.addi %arg7, %c8_i32_51 : i32
      %c8_i32_52 = arith.constant 8 : i32
      %80 = arith.cmpi slt, %79, %c8_i32_52 : i32
      %81 = arith.extui %80 : i1 to i32
      %c0_i32_53 = arith.constant 0 : i32
      %82 = arith.cmpi ne, %81, %c0_i32_53 : i32
      scf.if %82 {
        %c8_i32_54 = arith.constant 8 : i32
        %83 = arith.addi %arg7, %c8_i32_54 : i32
        %84 = arith.addi %0, %83 : i32
        %85 = arith.index_cast %84 : i32 to index
        %86 = memref.load %arg1[%85] : memref<16xi32, #tpu.memory_space<smem>>
        %c8_i32_55 = arith.constant 8 : i32
        %c0_i32_56 = arith.constant 0 : i32
        %87 = arith.cmpi eq, %c8_i32_55, %c0_i32_56 : i32
        %c1_i32_57 = arith.constant 1 : i32
        %88 = arith.select %87, %c1_i32_57, %c8_i32_55 : i32
        %89 = arith.remsi %83, %88 : i32
        %c0_i32_58 = arith.constant 0 : i32
        %90 = arith.cmpi ne, %89, %c0_i32_58 : i32
        %c0_i32_59 = arith.constant 0 : i32
        %91 = arith.cmpi slt, %89, %c0_i32_59 : i32
        %c0_i32_60 = arith.constant 0 : i32
        %92 = arith.cmpi slt, %88, %c0_i32_60 : i32
        %93 = arith.xori %91, %92 : i1
        %94 = arith.andi %93, %90 : i1
        %95 = arith.addi %89, %88 : i32
        %96 = arith.select %94, %95, %89 : i32
        %c0_i32_61 = arith.constant 0 : i32
        %97 = tpu.memref_slice %arg2[%86, %c0_i32_61] : memref<512x128xf32, #tpu.memory_space<any>> -> memref<1x128xf32, #tpu.memory_space<any>>
        %c0_i32_62 = arith.constant 0 : i32
        %98 = tpu.memref_slice %arg5[%83, %c0_i32_62] : memref<8x128xf32, #tpu.memory_space<vmem>> -> memref<1x128xf32, #tpu.memory_space<vmem>>
        %99 = tpu.memref_slice %arg6[%96] : memref<8x!tpu.dma_semaphore, #tpu.memory_space<semaphore_mem>> -> memref<1x!tpu.dma_semaphore, #tpu.memory_space<semaphore_mem>>
        %100 = tpu.memref_squeeze %99 : memref<1x!tpu.dma_semaphore, #tpu.memory_space<semaphore_mem>> -> memref<!tpu.dma_semaphore, #tpu.memory_space<semaphore_mem>>
        tpu.enqueue_dma source(%97 : memref<1x128xf32, #tpu.memory_space<any>>) target(%98 : memref<1x128xf32, #tpu.memory_space<vmem>>) target_semaphore(%100 : memref<!tpu.dma_semaphore, #tpu.memory_space<semaphore_mem>>)
      } else {
      }
    }
    %c8_i32_35 = arith.constant 8 : i32
    %c0 = arith.constant 0 : index
    %c0_36 = arith.constant 0 : index
    %58 = vector.load %arg5[%c0, %c0_36] : memref<8x128xf32, #tpu.memory_space<vmem>>, vector<8x128xf32>
    %c0_37 = arith.constant 0 : index
    %c0_38 = arith.constant 0 : index
    %59 = vector.load %arg3[%c0_37, %c0_38] : memref<8x128xf32, #tpu.memory_space<vmem>>, vector<8x128xf32>
    %60 = arith.addf %58, %59 : vector<8x128xf32>
    %61 = arith.truncf %60 : vector<8x128xf32> to vector<8x128xbf16>
    %c0_39 = arith.constant 0 : index
    %c0_40 = arith.constant 0 : index
    %c0_41 = arith.constant 0 : index
    %62 = vector.load %arg4[%c0_39, %c0_40, %c0_41] : memref<1x8x128xbf16, #tpu.memory_space<vmem>>, vector<1x8x128xbf16>
    %63 = vector.shape_cast %62 : vector<1x8x128xbf16> to vector<8x128xbf16>
    %64 = vector.shape_cast %61 : vector<8x128xbf16> to vector<1x8x128xbf16>
    tpu.vector_store %arg4[%c0_39, %c0_40, %c0_41], %64 {strides = array<i32>} : memref<1x8x128xbf16, #tpu.memory_space<vmem>>, vector<1x8x128xbf16>,
    return
  }
  func.func @transform_1(%arg0: i32, %arg1: memref<16xi32, #tpu.memory_space<smem>>) -> (i32, i32) {
    %c0_i32 = arith.constant 0 : i32
    %c0_i32_0 = arith.constant 0 : i32
    %c0_i32_1 = arith.constant 0 : i32
    return %c0_i32, %c0_i32_0 : i32, i32
  }
  func.func @transform_2(%arg0: i32, %arg1: memref<16xi32, #tpu.memory_space<smem>>) -> (i32, i32, i32) {
    %c0_i32 = arith.constant 0 : i32
    %c0_i32_0 = arith.constant 0 : i32
    %c0_i32_1 = arith.constant 0 : i32
    return %arg0, %c0_i32, %c0_i32_0 : i32, i32, i32
  }
}

</mosaic_0001>

<llo_original>
// kernel: tpu_custom_call.1
$region0: #{tpu_custom_call.1}
  #allocation0 [shape = 'u32[]', space=smem, size = 0x4, offset = 0x4, fixed_abs, tag = 'smem constant byte address 0x4 - core index']
  #allocation1 [shape = 'u32[144,128]{1,0:T(1,128)}', space=vmem, size = 0x12000, scoped, tag = 'internal scratch']
  #allocation2 [shape = 'f32[8,128]{1,0:T(8,128)}', space=vmem, size = 0x1000, scoped, tag = 'scratch operand']
  #allocation3 [shape = 's32[8]{0}', space=sflag, size = 0x20, scoped, tag = 'scratch operand']
  #allocation4 [shape = 's32[1]{0}', space=sflag, size = 0x4, scoped, tag = 'scoped memory for tpu_custom_call.1']
  #allocation5 [shape = 'u8[512]{0}', space=smem, size = 0x200, scoped, tag = 'prefetched SMEM operand 0']
  #allocation10 [shape = 's32[]', space=sflag, size = 0x4, offset = 0, fixed_abs, tag = 'sflag constant byte address 0x0 - dummy sync flag']
  #allocation11 [shape = 's32[]', space=sflag, size = 0x4, offset = 0, fixed_abs, tag = 'sflag constant byte address 0x0 - dummy sync flag']
  #allocation12 [shape = 'u32[]', space=smem, size = 0x4, offset = 0x44, fixed_abs, tag = 'smem constant byte address 0x44 - assertion arg 0']
  #allocation13 [shape = 'u32[]', space=smem, size = 0x4, offset = 0x48, fixed_abs, tag = 'smem constant byte address 0x48 - assertion arg 1']
  #allocation14 [shape = 's32[]', space=sflag, size = 0x4, offset = 0, fixed_abs, tag = 'sflag constant byte address 0x0 - dummy sync flag']
  #allocation15 [shape = 's32[]', space=sflag, size = 0x4, offset = 0, fixed_abs, tag = 'sflag constant byte address 0x0 - dummy sync flag']
  #allocation16 [shape = 's32[]', space=sflag, size = 0x4, offset = 0, fixed_abs, tag = 'sflag constant byte address 0x0 - dummy sync flag']
  #allocation17 [shape = 's32[]', space=sflag, size = 0x4, offset = 0, fixed_abs, tag = 'sflag constant byte address 0x0 - dummy sync flag']
  #allocation18 [shape = 's32[]', space=sflag, size = 0x4, offset = 0, fixed_abs, tag = 'sflag constant byte address 0x0 - dummy sync flag']
  #allocation19 [shape = 's32[]', space=sflag, size = 0x4, offset = 0, fixed_abs, tag = 'sflag constant byte address 0x0 - dummy sync flag']
  #allocation20 [shape = 's32[]', space=sflag, size = 0x4, offset = 0, fixed_abs, tag = 'sflag constant byte address 0x0 - dummy sync flag']
  #allocation21 [shape = 's32[]', space=sflag, size = 0x4, offset = 0, fixed_abs, tag = 'sflag constant byte address 0x0 - dummy sync flag']
  #allocation22 [shape = 's32[]', space=sflag, size = 0x4, offset = 0, fixed_abs, tag = 'sflag constant byte address 0x0 - dummy sync flag']
  #allocation23 [shape = 's32[]', space=sflag, size = 0x4, offset = 0, fixed_abs, tag = 'sflag constant byte address 0x0 - dummy sync flag']
  #allocation24 [shape = 's32[]', space=sflag, size = 0x4, offset = 0, fixed_abs, tag = 'sflag constant byte address 0x0 - dummy sync flag']
  #allocation25 [shape = 's32[]', space=sflag, size = 0x4, offset = 0, fixed_abs, tag = 'sflag constant byte address 0x0 - dummy sync flag']
  #allocation26 [shape = 's32[]', space=sflag, size = 0x4, offset = 0, fixed_abs, tag = 'sflag constant byte address 0x0 - dummy sync flag']
  #allocation27 [shape = 's32[]', space=sflag, size = 0x4, offset = 0, fixed_abs, tag = 'sflag constant byte address 0x0 - dummy sync flag']
  #allocation28 [shape = 's32[]', space=sflag, size = 0x4, offset = 0, fixed_abs, tag = 'sflag constant byte address 0x0 - dummy sync flag']
  #allocation29 [shape = 's32[]', space=sflag, size = 0x4, offset = 0, fixed_abs, tag = 'sflag constant byte address 0x0 - dummy sync flag']
  %s0 = inlined_call_operand.hbm [shape: s32[16], index: 0, kind: input, shape index: {}]
  %s1 = inlined_call_operand.hbm [shape: f32[512,128], index: 1, kind: input, shape index: {}]
  %s2 = inlined_call_operand.hbm [shape: f32[8,128], index: 2, kind: input, shape index: {}]
  %s3 = inlined_call_operand.hbm [shape: bf16[2,8,128], index: 3, kind: output, shape index: {}]
  %s4 = sld [smem:[#allocation0]]
  $region88: #{tpu_custom_call.1} parent=0
    _
  %s6 = ssub.s32 1, %s4
  %s7 = scalar_select 0, %s6, %s4
  %9 = dma.hbm_to_smem %s0, 16, [#allocation5], [#allocation4]
  %10 = dma.done [#allocation4], 16
  %11 = sfence
  $region1: #{tpu_custom_call.1} parent=0
    #allocation6 [shape = 'u8[4096]{0}', space=vmem, size = 0x1000, scoped, tag = 'input window, operand 2, single buffered']
    #allocation7 [shape = 's32[2]{0}', space=sflag, size = 0x8, scoped, tag = 'scoped memory for tpu_custom_call.1']
    #allocation8 [shape = 's32[2]{0}', space=sflag, size = 0x8, scoped, tag = 'scoped memory for tpu_custom_call.1']
    #allocation9 [shape = 'u8[4096]{0}', space=vmem, size = 0x1000, scoped, tag = 'output window, operand 0']
    %12 = vsyncpa [#allocation7], 0
    %13 = vsyncpa [#allocation8], 0
    %s14 = scalar_lea.sflag [#allocation8], 1
    %15 = vsyncpa %s14, 0
    loop: start=0, step=1, limit=4
    $region2: #{tpu_custom_call.1} parent=1 // loop_pre_header
      _
    $region3: #{tpu_custom_call.1} parent=1 // loop_header
      %s17 = sphi 0, %s21
      %p18 = scmp.ge.s32.totalorder %s17, 4
      %s25 = sphi 0, %s25
      %s27 = sphi 0, %s25
      %s28 = sphi 0, %s27
      %s42 = sphi 0, %s28
      %s48 = sphi 0, %s50
      %s51 = sphi 0, %s48
      %s52 = sphi 0, %s51
      %s68 = sphi 0, %s52
    $region4: #{tpu_custom_call.1} parent=1 // loop_header_branch
      %20 = sbr.rel (%p18) target = $region8
    $region5: #{tpu_custom_call.1} parent=1 // loop_body
      %s22 = ssub.s32 %s17, 1
      %s23 = ssub.s32 %s17, 2
      %s24 = sadd.s32 %s17, 1
      %s26 = sadd.s32 %s25, 1
      %p29 = scmp.eq.s32.totalorder %s17, 1
      %p30 = scmp.ne.s32.totalorder %s25, %s27
      %p31 = scmp.eq.s32.totalorder %s17, 0
      %p32 = por %p30, %p31
      %p33 = scmp.ne.s32.totalorder %s25, %s27
      %p34 = scmp.eq.s32.totalorder %s22, 1
      %p35 = por %p33, %p34
      %p36 = scmp.ne.s32.totalorder %s27, %s28
      %p37 = scmp.eq.s32.totalorder %s22, 0
      %p38 = por %p36, %p37
      %p39 = scmp.ne.s32.totalorder %s27, %s28
      %p40 = scmp.eq.s32.totalorder %s23, 1
      %p41 = por %p39, %p40
      %p43 = scmp.ne.s32.totalorder %s28, %s42
      %p44 = scmp.eq.s32.totalorder %s23, 0
      %p45 = por %p43, %p44
      %s46 = ssub.s32 %s17, %s24
      %p47 = scmp.eq.s32.totalorder %s46, 0
      %s49 = sadd.s32 %s48, 1
      %s50 = scalar_select %p47, %s48, %s49
      %p53 = pneg %p47
      %p54 = scmp.eq.s32.totalorder %s17, 1
      %p55 = por %p53, %p54
      %p56 = scmp.ne.s32.totalorder %s48, %s51
      %p57 = scmp.eq.s32.totalorder %s17, 0
      %p58 = por %p56, %p57
      %p59 = scmp.ne.s32.totalorder %s48, %s51
      %p60 = scmp.eq.s32.totalorder %s22, 1
      %p61 = por %p59, %p60
      %p62 = scmp.ne.s32.totalorder %s51, %s52
      %p63 = scmp.eq.s32.totalorder %s22, 0
      %p64 = por %p62, %p63
      %p65 = scmp.ne.s32.totalorder %s51, %s52
      %p66 = scmp.eq.s32.totalorder %s23, 1
      %p67 = por %p65, %p66
      %p69 = scmp.ne.s32.totalorder %s52, %s68
      %p70 = scmp.eq.s32.totalorder %s23, 0
      %p71 = por %p69, %p70
      %p72 = scmp.le.s32.totalorder 1, %s17
      %p73 = scmp.lt.s32.totalorder %s17, 3
      %p74 = pnand %p72, %p73
      %p75 = pneg %p74
      // Predicated region
      $region9: #{tpu_custom_call.1} parent=5 // pred_check
        _
      $region10: #{tpu_custom_call.1} parent=5 // pred_check_branch
        %77 = sbr.rel (%p74) target = $region12
      $region11: #{tpu_custom_call.1} parent=5 // pred_region
        %s78 = ssub.s32 %s17, 1
        // Predicated region
        $region13: #{tpu_custom_call.1} parent=11 // pred_check
          %p79 = pneg %p38
        $region14: #{tpu_custom_call.1} parent=11 // pred_check_branch
          %81 = sbr.rel (%p79) target = $region16
        $region15: #{tpu_custom_call.1} parent=11 // pred_region
          %s83 = ssub.s32 128, 128
          %84 = vsyncadd [#allocation7], %s83
          %s86 = sshll.u32 [#allocation6], 4
          %s87 = int_to_ptr.vmem [resolvable:$true] %s86
          %89 = dma.hbm_to_vmem [thread:$0]  %s2, 128, %s87, [#allocation7]
        $region16: #{tpu_custom_call.1} parent=11 // pred_fallthru
          _
      $region12: #{tpu_custom_call.1} parent=5 // pred_fallthru
        _
      %p90 = scmp.lt.s32.totalorder %s17, 2
      // Predicated region
      $region17: #{tpu_custom_call.1} parent=5 // pred_check
        %p91 = pneg %p90
      $region18: #{tpu_custom_call.1} parent=5 // pred_check_branch
        %93 = sbr.rel (%p91) target = $region20
      $region19: #{tpu_custom_call.1} parent=5 // pred_region
        _
      $region20: #{tpu_custom_call.1} parent=5 // pred_fallthru
        _
      %p94 = scmp.le.s32.totalorder 1, %s17
      %p95 = scmp.lt.s32.totalorder %s17, 3
      %p96 = pnand %p94, %p95
      %p97 = pneg %p96
      // Predicated region
      $region21: #{tpu_custom_call.1} parent=5 // pred_check
        _
      $region22: #{tpu_custom_call.1} parent=5 // pred_check_branch
        %99 = sbr.rel (%p96) target = $region24
      $region23: #{tpu_custom_call.1} parent=5 // pred_region
        %s100 = ssub.s32 %s17, 1
        // Predicated region
        $region25: #{tpu_custom_call.1} parent=23 // pred_check
          %p101 = pneg %p38
        $region26: #{tpu_custom_call.1} parent=23 // pred_check_branch
          %103 = sbr.rel (%p101) target = $region28
        $region27: #{tpu_custom_call.1} parent=23 // pred_region
          %104 = dma.done [#allocation7], 128
        $region28: #{tpu_custom_call.1} parent=23 // pred_fallthru
          _
        %p105 = pneg %p38
        %p106 = pneg %p35
        %p107 = pneg %p64
        %p108 = pneg %p61
        %s109 = sand.u32 %s51, 1
        %s110 = scalar_lea.sflag [#allocation8], %s109
        %s111 = sand.u32 %s51, 1
        %s112 = smul.addr %s111, 4
        %s113 = scalar_lea.vmem [#allocation9], %s112
        %s114 = smul.u32 %s22, 8
        %s115 = sld [smem:[#allocation5 + %s114]]
        %s116 = smul.addr %s115, 16
        %s117 = scalar_lea.hbm %s1, %s116
        // Predicated region
        $region29: #{tpu_custom_call.1} parent=23 // pred_check
          _
        $region30: #{tpu_custom_call.1} parent=23 // pred_check_branch
          %119 = sbr.rel target = $region32
        $region31: #{tpu_custom_call.1} parent=23 // pred_region
          %120 = sst [smem:[#allocation12]] [#allocation11]
          %121 = sst [smem:[#allocation13]] [#allocation10]
        $region32: #{tpu_custom_call.1} parent=23 // pred_fallthru
          _
        %123 = shalt.err (0)
        %s125 = sshll.u32 [#allocation2], 4
        %s126 = int_to_ptr.vmem [resolvable:$true] %s125
        %128 = dma.hbm_to_vmem [thread:$0]  %s117, 16, %s126, [#allocation3]
        %s129 = sadd.s32 %s114, 1
        %s130 = sld [smem:[#allocation5 + %s129]]
        %s131 = smul.addr %s130, 16
        %s132 = scalar_lea.hbm %s1, %s131
        %s133 = scalar_lea.vmem [#allocation2], 1
        %s134 = scalar_lea.sflag [#allocation3], 1
        // Predicated region
        $region33: #{tpu_custom_call.1} parent=23 // pred_check
          _
        $region34: #{tpu_custom_call.1} parent=23 // pred_check_branch
          %136 = sbr.rel target = $region36
        $region35: #{tpu_custom_call.1} parent=23 // pred_region
          %137 = sst [smem:[#allocation12]] [#allocation15]
          %138 = sst [smem:[#allocation13]] [#allocation14]
        $region36: #{tpu_custom_call.1} parent=23 // pred_fallthru
          _
        %140 = shalt.err (0)
        %s142 = sshll.u32 %s133, 4
        %s143 = int_to_ptr.vmem [resolvable:$true] %s142
        %145 = dma.hbm_to_vmem [thread:$0]  %s132, 16, %s143, %s134
        %s146 = sadd.s32 %s114, 2
        %s147 = sld [smem:[#allocation5 + %s146]]
        %s148 = smul.addr %s147, 16
        %s149 = scalar_lea.hbm %s1, %s148
        %s150 = scalar_lea.vmem [#allocation2], 2
        %s151 = scalar_lea.sflag [#allocation3], 2
        // Predicated region
        $region37: #{tpu_custom_call.1} parent=23 // pred_check
          _
        $region38: #{tpu_custom_call.1} parent=23 // pred_check_branch
          %153 = sbr.rel target = $region40
        $region39: #{tpu_custom_call.1} parent=23 // pred_region
          %154 = sst [smem:[#allocation12]] [#allocation17]
          %155 = sst [smem:[#allocation13]] [#allocation16]
        $region40: #{tpu_custom_call.1} parent=23 // pred_fallthru
          _
        %157 = shalt.err (0)
        %s159 = sshll.u32 %s150, 4
        %s160 = int_to_ptr.vmem [resolvable:$true] %s159
        %162 = dma.hbm_to_vmem [thread:$0]  %s149, 16, %s160, %s151
        %s163 = sadd.s32 %s114, 3
        %s164 = sld [smem:[#allocation5 + %s163]]
        %s165 = smul.addr %s164, 16
        %s166 = scalar_lea.hbm %s1, %s165
        %s167 = scalar_lea.vmem [#allocation2], 3
        %s168 = scalar_lea.sflag [#allocation3], 3
        // Predicated region
        $region41: #{tpu_custom_call.1} parent=23 // pred_check
          _
        $region42: #{tpu_custom_call.1} parent=23 // pred_check_branch
          %170 = sbr.rel target = $region44
        $region43: #{tpu_custom_call.1} parent=23 // pred_region
          %171 = sst [smem:[#allocation12]] [#allocation19]
          %172 = sst [smem:[#allocation13]] [#allocation18]
        $region44: #{tpu_custom_call.1} parent=23 // pred_fallthru
          _
        %174 = shalt.err (0)
        %s176 = sshll.u32 %s167, 4
        %s177 = int_to_ptr.vmem [resolvable:$true] %s176
        %179 = dma.hbm_to_vmem [thread:$0]  %s166, 16, %s177, %s168
        %s180 = sadd.s32 %s114, 4
        %s181 = sld [smem:[#allocation5 + %s180]]
        %s182 = smul.addr %s181, 16
        %s183 = scalar_lea.hbm %s1, %s182
        %s184 = scalar_lea.vmem [#allocation2], 4
        %s185 = scalar_lea.sflag [#allocation3], 4
        // Predicated region
        $region45: #{tpu_custom_call.1} parent=23 // pred_check
          _
        $region46: #{tpu_custom_call.1} parent=23 // pred_check_branch
          %187 = sbr.rel target = $region48
        $region47: #{tpu_custom_call.1} parent=23 // pred_region
          %188 = sst [smem:[#allocation12]] [#allocation21]
          %189 = sst [smem:[#allocation13]] [#allocation20]
        $region48: #{tpu_custom_call.1} parent=23 // pred_fallthru
          _
        %191 = shalt.err (0)
        %s193 = sshll.u32 %s184, 4
        %s194 = int_to_ptr.vmem [resolvable:$true] %s193
        %196 = dma.hbm_to_vmem [thread:$0]  %s183, 16, %s194, %s185
        %s197 = sadd.s32 %s114, 5
        %s198 = sld [smem:[#allocation5 + %s197]]
        %s199 = smul.addr %s198, 16
        %s200 = scalar_lea.hbm %s1, %s199
        %s201 = scalar_lea.vmem [#allocation2], 5
        %s202 = scalar_lea.sflag [#allocation3], 5
        // Predicated region
        $region49: #{tpu_custom_call.1} parent=23 // pred_check
          _
        $region50: #{tpu_custom_call.1} parent=23 // pred_check_branch
          %204 = sbr.rel target = $region52
        $region51: #{tpu_custom_call.1} parent=23 // pred_region
          %205 = sst [smem:[#allocation12]] [#allocation23]
          %206 = sst [smem:[#allocation13]] [#allocation22]
        $region52: #{tpu_custom_call.1} parent=23 // pred_fallthru
          _
        %208 = shalt.err (0)
        %s210 = sshll.u32 %s201, 4
        %s211 = int_to_ptr.vmem [resolvable:$true] %s210
        %213 = dma.hbm_to_vmem [thread:$0]  %s200, 16, %s211, %s202
        %s214 = sadd.s32 %s114, 6
        %s215 = sld [smem:[#allocation5 + %s214]]
        %s216 = smul.addr %s215, 16
        %s217 = scalar_lea.hbm %s1, %s216
        %s218 = scalar_lea.vmem [#allocation2], 6
        %s219 = scalar_lea.sflag [#allocation3], 6
        // Predicated region
        $region53: #{tpu_custom_call.1} parent=23 // pred_check
          _
        $region54: #{tpu_custom_call.1} parent=23 // pred_check_branch
          %221 = sbr.rel target = $region56
        $region55: #{tpu_custom_call.1} parent=23 // pred_region
          %222 = sst [smem:[#allocation12]] [#allocation25]
          %223 = sst [smem:[#allocation13]] [#allocation24]
        $region56: #{tpu_custom_call.1} parent=23 // pred_fallthru
          _
        %225 = shalt.err (0)
        %s227 = sshll.u32 %s218, 4
        %s228 = int_to_ptr.vmem [resolvable:$true] %s227
        %230 = dma.hbm_to_vmem [thread:$0]  %s217, 16, %s228, %s219
        %s231 = sadd.s32 %s114, 7
        %s232 = sld [smem:[#allocation5 + %s231]]
        %s233 = smul.addr %s232, 16
        %s234 = scalar_lea.hbm %s1, %s233
        %s235 = scalar_lea.vmem [#allocation2], 7
        %s236 = scalar_lea.sflag [#allocation3], 7
        // Predicated region
        $region57: #{tpu_custom_call.1} parent=23 // pred_check
          _
        $region58: #{tpu_custom_call.1} parent=23 // pred_check_branch
          %238 = sbr.rel target = $region60
        $region59: #{tpu_custom_call.1} parent=23 // pred_region
          %239 = sst [smem:[#allocation12]] [#allocation27]
          %240 = sst [smem:[#allocation13]] [#allocation26]
        $region60: #{tpu_custom_call.1} parent=23 // pred_fallthru
          _
        %242 = shalt.err (0)
        %s244 = sshll.u32 %s235, 4
        %s245 = int_to_ptr.vmem [resolvable:$true] %s244
        %247 = dma.hbm_to_vmem [thread:$0]  %s234, 16, %s245, %s236
        loop: start=0, step=1, limit=8
        $region61: #{tpu_custom_call.1} parent=23 // loop_pre_header
          _
        $region62: #{tpu_custom_call.1} parent=23 // loop_header
          %s249 = sphi 0, %s253
          %p250 = scmp.ge.s32.totalorder %s249, 8
        $region63: #{tpu_custom_call.1} parent=23 // loop_header_branch
          %252 = sbr.rel (%p250) target = $region67
        $region64: #{tpu_custom_call.1} parent=23 // loop_body
          %p254 = scmp.lt.s32.totalorder %s249, 0
          %s255 = ssub.s32 0, %s249
          %s256 = scalar_select %p254, %s255, %s249
          %s257 = sand.u32 %s256, 7
          %s258 = ssub.s32 0, %s257
          %s259 = scalar_select %p254, %s258, %s257
          %p260 = scmp.ne.s32.totalorder %s259, 0
          %p261 = scmp.lt.s32.totalorder %s259, 0
          %p262 = pnand %p261, %p260
          %p263 = pneg %p262
          %s264 = sadd.s32 %s259, 8
          %s265 = scalar_select %p263, %s264, %s259
          %s266 = scalar_lea.sflag [#allocation3], %s265
          %s267 = smul.u32 1, 1
          %s268 = sshll.u32 %s267, 4
          %269 = dma.done %s266, %s268
          %s270 = sadd.s32 %s249, 8
          %p271 = scmp.lt.s32.totalorder %s270, 8
          // Predicated region
          $region68: #{tpu_custom_call.1} parent=64 // pred_check
            %p272 = pneg %p271
          $region69: #{tpu_custom_call.1} parent=64 // pred_check_branch
            %274 = sbr.rel (%p272) target = $region71
          $region70: #{tpu_custom_call.1} parent=64 // pred_region
            %s275 = sadd.s32 %s114, %s270
            %s276 = sld [smem:[#allocation5 + %s275]]
            %p277 = scmp.lt.s32.totalorder %s270, 0
            %s278 = ssub.s32 0, %s270
            %s279 = scalar_select %p277, %s278, %s270
            %s280 = sand.u32 %s279, 7
            %s281 = ssub.s32 0, %s280
            %s282 = scalar_select %p277, %s281, %s280
            %p283 = scmp.ne.s32.totalorder %s282, 0
            %p284 = scmp.lt.s32.totalorder %s282, 0
            %p285 = pnand %p284, %p283
            %p286 = pneg %p285
            %s287 = sadd.s32 %s282, 8
            %s288 = scalar_select %p286, %s287, %s282
            %s289 = smul.addr %s276, 16
            %s290 = scalar_lea.hbm %s1, %s289
            %s291 = scalar_lea.vmem [#allocation2], %s270
            %s292 = scalar_lea.sflag [#allocation3], %s288
            // Predicated region
            $region72: #{tpu_custom_call.1} parent=70 // pred_check
              _
            $region73: #{tpu_custom_call.1} parent=70 // pred_check_branch
              %294 = sbr.rel target = $region75
            $region74: #{tpu_custom_call.1} parent=70 // pred_region
              %295 = sst [smem:[#allocation12]] [#allocation29]
              %296 = sst [smem:[#allocation13]] [#allocation28]
            $region75: #{tpu_custom_call.1} parent=70 // pred_fallthru
              _
            %298 = shalt.err (0)
            %s300 = sshll.u32 %s291, 4
            %s301 = int_to_ptr.vmem [resolvable:$true] %s300
            %303 = dma.hbm_to_vmem [thread:$0]  %s290, 16, %s301, %s292
          $region71: #{tpu_custom_call.1} parent=64 // pred_fallthru
            _
        $region65: #{tpu_custom_call.1} parent=23 // loop_footer
          %s253 = sadd.s32 1, %s249
        $region66: #{tpu_custom_call.1} parent=23 // loop_footer_branch
          %248 = sbr.rel target = $region62
        $region67: #{tpu_custom_call.1} parent=23 // loop_exit
          _
        %v304 = vld [vmem:[#allocation2] sm:$0xff]
        %v305 = vld [vmem:[#allocation6] sm:$0xff]
        %v306 = vadd.f32 %v304, %v305
        %v307 = vpack.c.bf16 %v306, %v306
        %308 = vst [vmem:[%s113] sm:$0xf] %v307
        %s309 = sand.u32 %s51, 1
        %s310 = scalar_lea.sflag [#allocation8], %s309
        %s311 = sand.u32 %s51, 1
        %s312 = smul.addr %s311, 4
        %s313 = scalar_lea.vmem [#allocation9], %s312
        // Predicated region
        $region76: #{tpu_custom_call.1} parent=23 // pred_check
          %p314 = pneg %p61
        $region77: #{tpu_custom_call.1} parent=23 // pred_check_branch
          %316 = sbr.rel (%p314) target = $region79
        $region78: #{tpu_custom_call.1} parent=23 // pred_region
          %s318 = ssub.s32 64, 64
          %319 = vsyncadd %s310, %s318
          %s320 = smul.addr %s22, 64
          %s321 = scalar_lea.hbm %s3, %s320
          %s323 = sshll.u32 %s313, 4
          %s324 = int_to_ptr.vmem [resolvable:$true] %s323
          %326 = dma.vmem_to_hbm [thread:$0]  %s324, 64, %s321, %s310
        $region79: #{tpu_custom_call.1} parent=23 // pred_fallthru
          _
      $region24: #{tpu_custom_call.1} parent=5 // pred_fallthru
        _
      %p327 = scmp.le.s32.totalorder 2, %s17
      // Predicated region
      $region80: #{tpu_custom_call.1} parent=5 // pred_check
        %p328 = pneg %p327
      $region81: #{tpu_custom_call.1} parent=5 // pred_check_branch
        %330 = sbr.rel (%p328) target = $region83
      $region82: #{tpu_custom_call.1} parent=5 // pred_region
        %s331 = ssub.s32 %s17, 2
        // Predicated region
        $region84: #{tpu_custom_call.1} parent=82 // pred_check
          %p332 = pneg %p67
        $region85: #{tpu_custom_call.1} parent=82 // pred_check_branch
          %334 = sbr.rel (%p332) target = $region87
        $region86: #{tpu_custom_call.1} parent=82 // pred_region
          %s335 = sand.u32 %s52, 1
          %s336 = scalar_lea.sflag [#allocation8], %s335
          %s337 = sand.u32 %s52, 1
          %s338 = smul.addr %s337, 4
          %s339 = scalar_lea.vmem [#allocation9], %s338
          %340 = dma.done %s336, 64
        $region87: #{tpu_custom_call.1} parent=82 // pred_fallthru
          _
      $region83: #{tpu_custom_call.1} parent=5 // pred_fallthru
        _
    $region6: #{tpu_custom_call.1} parent=1 // loop_footer
      %s21 = sadd.s32 1, %s17
    $region7: #{tpu_custom_call.1} parent=1 // loop_footer_branch
      %16 = sbr.rel target = $region3
    $region8: #{tpu_custom_call.1} parent=1 // loop_exit
      _
    %341 = vsyncpa [#allocation7], 1
    %s342 = scalar_lea.sflag [#allocation7], 1
    %343 = vsyncpa %s342, 1
    %344 = vsyncpa [#allocation8], 1
    %s345 = scalar_lea.sflag [#allocation8], 1
    %346 = vsyncpa %s345, 1
  %347 = vsyncmov [#allocation3]
  %s348 = vpop.sfrf %347
  %p349 = scmp.eq.s32.totalorder %s348, 0
  %p350 = pneg %p349
  %352 = shalt.err (%p350)
  %s353 = scalar_lea.sflag [#allocation3], 1
  %354 = vsyncmov %s353
  %s355 = vpop.sfrf %354
  %p356 = scmp.eq.s32.totalorder %s355, 0
  %p357 = pneg %p356
  %359 = shalt.err (%p357)
  %s360 = scalar_lea.sflag [#allocation3], 2
  %361 = vsyncmov %s360
  %s362 = vpop.sfrf %361
  %p363 = scmp.eq.s32.totalorder %s362, 0
  %p364 = pneg %p363
  %366 = shalt.err (%p364)
  %s367 = scalar_lea.sflag [#allocation3], 3
  %368 = vsyncmov %s367
  %s369 = vpop.sfrf %368
  %p370 = scmp.eq.s32.totalorder %s369, 0
  %p371 = pneg %p370
  %373 = shalt.err (%p371)
  %s374 = scalar_lea.sflag [#allocation3], 4
  %375 = vsyncmov %s374
  %s376 = vpop.sfrf %375
  %p377 = scmp.eq.s32.totalorder %s376, 0
  %p378 = pneg %p377
  %380 = shalt.err (%p378)
  %s381 = scalar_lea.sflag [#allocation3], 5
  %382 = vsyncmov %s381
  %s383 = vpop.sfrf %382
  %p384 = scmp.eq.s32.totalorder %s383, 0
  %p385 = pneg %p384
  %387 = shalt.err (%p385)
  %s388 = scalar_lea.sflag [#allocation3], 6
  %389 = vsyncmov %s388
  %s390 = vpop.sfrf %389
  %p391 = scmp.eq.s32.totalorder %s390, 0
  %p392 = pneg %p391
  %394 = shalt.err (%p392)
  %s395 = scalar_lea.sflag [#allocation3], 7
  %396 = vsyncmov %s395
  %s397 = vpop.sfrf %396
  %p398 = scmp.eq.s32.totalorder %s397, 0
  %p399 = pneg %p398
  %401 = shalt.err (%p399)

</llo_original>
